<compile_context>
chip_gen: v7x
topology: tpu7x:2x2x1
jax: 0.10.0
libtpu: 0.0.40
codegen_flags: <defaults>
</compile_context>

<pallas_src>
import functools

import jax
import jax.numpy as jnp
from jax.experimental import pallas as pl
from jax.experimental.pallas import tpu as pltpu

HIDDEN = 256
LANE = 128


def _round_up(x, m):
    return ((x + m - 1) // m) * m


def _actor_kernel(x_ref, w1_ref, b1_ref, w2_ref, b2_ref, w3_ref, b3_ref,
                  o_ref, *, action_limit):
    """(TB, S) -> 256 -> ReLU -> 256 -> ReLU -> A_pad -> tanh -> * action_limit."""
    x = x_ref[...].astype(jnp.bfloat16)                      # bf16 MXU operands
    h1 = jnp.dot(x, w1_ref[...],
                 preferred_element_type=jnp.float32) + b1_ref[...]
    h1 = jnp.maximum(h1, 0.0)                                # f32 elementwise
    h2 = jnp.dot(h1.astype(jnp.bfloat16), w2_ref[...],
                 preferred_element_type=jnp.float32) + b2_ref[...]
    h2 = jnp.maximum(h2, 0.0)
    a = jnp.dot(h2.astype(jnp.bfloat16), w3_ref[...],
                preferred_element_type=jnp.float32) + b3_ref[...]
    o_ref[...] = (jnp.tanh(a) * action_limit).astype(o_ref.dtype)


def actor_forward(params, state, *, action_dim, action_limit, block_b=512):
    """Fused Pallas actor forward. state: (B, S) f32 -> (B, action_dim) f32."""
    state = state.astype(jnp.float32)
    B, S = state.shape
    A_pad = params["w3"].shape[1]          # lane-padded output width (mult of 128)

    TB = min(block_b, _round_up(B, 8))     # batch tile (multiple of 8 sublanes)
    B_pad = _round_up(B, TB)
    if B_pad != B:
        state = jnp.pad(state, ((0, B_pad - B), (0, 0)))

    kernel = functools.partial(_actor_kernel, action_limit=float(action_limit))

    def resident(shape):                   # weights stay pinned in VMEM
        return pl.BlockSpec(shape, lambda i: (0, 0))

    out = pl.pallas_call(
        kernel,
        out_shape=jax.ShapeDtypeStruct((B_pad, A_pad), jnp.float32),
        grid=(B_pad // TB,),
        in_specs=[
            pl.BlockSpec((TB, S), lambda i: (i, 0)),
            resident(params["w1"].shape), resident(params["b1"].shape),
            resident(params["w2"].shape), resident(params["b2"].shape),
            resident(params["w3"].shape), resident(params["b3"].shape),
        ],
        out_specs=pl.BlockSpec((TB, A_pad), lambda i: (i, 0)),
        compiler_params=pltpu.CompilerParams(
            dimension_semantics=("parallel",)),
    )(state, params["w1"], params["b1"], params["w2"], params["b2"],
      params["w3"], params["b3"])

    return out[:B, :action_dim]


actor_forward_jit = jax.jit(
    actor_forward, static_argnames=("action_dim", "action_limit", "block_b"))


def init_actor_params(key, state_dim, action_dim, hidden=HIDDEN):
    """PyTorch-Linear-style init (uniform +/- 1/sqrt(fan_in)); weights in bf16."""
    ks = jax.random.split(key, 6)
    a_pad = _round_up(action_dim, LANE)

    def lin(kw, kb, fan_in, fan_out):
        bound = 1.0 / jnp.sqrt(jnp.float32(fan_in))
        w = jax.random.uniform(kw, (fan_in, fan_out), jnp.float32, -bound, bound)
        b = jax.random.uniform(kb, (1, fan_out), jnp.float32, -bound, bound)
        return w, b

    w1, b1 = lin(ks[0], ks[1], state_dim, hidden)
    w2, b2 = lin(ks[2], ks[3], hidden, hidden)
    w3, b3 = lin(ks[4], ks[5], hidden, action_dim)
    # Pad layer-3 out-features to a 128-lane multiple -> lane-dense stores.
    w3 = jnp.pad(w3, ((0, 0), (0, a_pad - action_dim)))
    b3 = jnp.pad(b3, ((0, 0), (0, a_pad - action_dim)))
    # Matmul weights in bf16 (MXU-native on v6e/v7x), biases stay f32.
    return {"w1": w1.astype(jnp.bfloat16), "b1": b1,
            "w2": w2.astype(jnp.bfloat16), "b2": b2,
            "w3": w3.astype(jnp.bfloat16), "b3": b3}


def _reference_forward(params, state, *, action_dim, action_limit):
    """Pure-JAX reference with the same bf16-operand / f32-accumulate recipe."""
    x = state.astype(jnp.float32)
    h1 = jnp.maximum(jnp.dot(x.astype(jnp.bfloat16), params["w1"],
                             preferred_element_type=jnp.float32) + params["b1"], 0.0)
    h2 = jnp.maximum(jnp.dot(h1.astype(jnp.bfloat16), params["w2"],
                             preferred_element_type=jnp.float32) + params["b2"], 0.0)
    a = jnp.dot(h2.astype(jnp.bfloat16), params["w3"],
                preferred_element_type=jnp.float32) + params["b3"]
    return (jnp.tanh(a) * action_limit)[:, :action_dim]


if __name__ == "__main__":
    # Small humanoid-walk-like shapes; non-multiple-of-8 batch exercises padding.
    batch, state_dim, action_dim, action_limit = 37, 24, 8, 1.0

    key = jax.random.PRNGKey(0)
    k_params, k_state = jax.random.split(key)

    params = init_actor_params(k_params, state_dim, action_dim)
    state = jax.random.normal(k_state, (batch, state_dim), jnp.float32)

    act = actor_forward_jit(params, state,
                            action_dim=action_dim, action_limit=action_limit)
    jax.block_until_ready(act)

    ref = _reference_forward(params, state,
                             action_dim=action_dim, action_limit=action_limit)
    assert act.shape == (batch, action_dim)
    assert bool(jnp.all(jnp.abs(act) <= action_limit + 1e-5))
    assert jnp.allclose(act, ref, atol=2e-3, rtol=2e-3)

    print("KERNEL_OK")
</pallas_src>

<mosaic_0001>
module attributes {stable_mosaic.version = 11 : i64} {
  func.func @_actor_kernel(%arg0: i32, %arg1: memref<40x24xf32, #tpu.memory_space<vmem>>, %arg2: memref<24x256xbf16, #tpu.memory_space<vmem>>, %arg3: memref<1x256xf32, #tpu.memory_space<vmem>>, %arg4: memref<256x256xbf16, #tpu.memory_space<vmem>>, %arg5: memref<1x256xf32, #tpu.memory_space<vmem>>, %arg6: memref<256x128xbf16, #tpu.memory_space<vmem>>, %arg7: memref<1x128xf32, #tpu.memory_space<vmem>>, %arg8: memref<40x128xf32, #tpu.memory_space<vmem>>) attributes {dimension_semantics = [#tpu.dimension_semantics<parallel>], iteration_bounds = array<i64: 1>, scalar_prefetch = 0 : i64, scratch_operands = 0 : i64, tpu.core_type = #tpu.core_type<tc>, window_params = [{transform_indices = @transform_0, window_bounds = array<i64: 40, 24>}, {pipeline_mode = #tpu.pipeline_mode<synchronous>, transform_indices = @transform_1, window_bounds = array<i64: 24, 256>}, {pipeline_mode = #tpu.pipeline_mode<synchronous>, transform_indices = @transform_2, window_bounds = array<i64: 1, 256>}, {pipeline_mode = #tpu.pipeline_mode<synchronous>, transform_indices = @transform_3, window_bounds = array<i64: 256, 256>}, {pipeline_mode = #tpu.pipeline_mode<synchronous>, transform_indices = @transform_4, window_bounds = array<i64: 1, 256>}, {pipeline_mode = #tpu.pipeline_mode<synchronous>, transform_indices = @transform_5, window_bounds = array<i64: 256, 128>}, {pipeline_mode = #tpu.pipeline_mode<synchronous>, transform_indices = @transform_6, window_bounds = array<i64: 1, 128>}, {transform_indices = @transform_7, window_bounds = array<i64: 40, 128>}]} {
    %c0 = arith.constant 0 : index
    %c0_0 = arith.constant 0 : index
    %0 = vector.load %arg1[%c0, %c0_0] : memref<40x24xf32, #tpu.memory_space<vmem>>, vector<40x24xf32>
    %1 = arith.truncf %0 : vector<40x24xf32> to vector<40x24xbf16>
    %c0_1 = arith.constant 0 : index
    %c0_2 = arith.constant 0 : index
    %2 = vector.load %arg2[%c0_1, %c0_2] : memref<24x256xbf16, #tpu.memory_space<vmem>>, vector<24x256xbf16>
    %cst = arith.constant dense<0.000000e+00> : vector<40x256xf32>
    %3 = tpu.matmul %1, %2, %cst {dimension_numbers = #tpu.dot_dimension_numbers<[1], [0], [0], [1], [0, 0, 1, 1], [], []>} : vector<40x24xbf16>, vector<24x256xbf16>, vector<40x256xf32> -> vector<40x256xf32>
    %c0_3 = arith.constant 0 : index
    %c0_4 = arith.constant 0 : index
    %4 = vector.load %arg3[%c0_3, %c0_4] : memref<1x256xf32, #tpu.memory_space<vmem>>, vector<1x256xf32>
    %5 = vector.broadcast %4 : vector<1x256xf32> to vector<40x256xf32>
    %6 = arith.addf %3, %5 : vector<40x256xf32>
    %cst_5 = arith.constant 0.000000e+00 : f32
    %7 = vector.broadcast %cst_5 : f32 to vector<40x256xf32>
    %8 = arith.maximumf %6, %7 : vector<40x256xf32>
    %9 = arith.truncf %8 : vector<40x256xf32> to vector<40x256xbf16>
    %c0_6 = arith.constant 0 : index
    %c0_7 = arith.constant 0 : index
    %10 = vector.load %arg4[%c0_6, %c0_7] : memref<256x256xbf16, #tpu.memory_space<vmem>>, vector<256x256xbf16>
    %cst_8 = arith.constant dense<0.000000e+00> : vector<40x256xf32>
    %11 = tpu.matmul %9, %10, %cst_8 {dimension_numbers = #tpu.dot_dimension_numbers<[1], [0], [0], [1], [0, 0, 1, 1], [], []>} : vector<40x256xbf16>, vector<256x256xbf16>, vector<40x256xf32> -> vector<40x256xf32>
    %c0_9 = arith.constant 0 : index
    %c0_10 = arith.constant 0 : index
    %12 = vector.load %arg5[%c0_9, %c0_10] : memref<1x256xf32, #tpu.memory_space<vmem>>, vector<1x256xf32>
    %13 = vector.broadcast %12 : vector<1x256xf32> to vector<40x256xf32>
    %14 = arith.addf %11, %13 : vector<40x256xf32>
    %cst_11 = arith.constant 0.000000e+00 : f32
    %15 = vector.broadcast %cst_11 : f32 to vector<40x256xf32>
    %16 = arith.maximumf %14, %15 : vector<40x256xf32>
    %17 = arith.truncf %16 : vector<40x256xf32> to vector<40x256xbf16>
    %c0_12 = arith.constant 0 : index
    %c0_13 = arith.constant 0 : index
    %18 = vector.load %arg6[%c0_12, %c0_13] : memref<256x128xbf16, #tpu.memory_space<vmem>>, vector<256x128xbf16>
    %cst_14 = arith.constant dense<0.000000e+00> : vector<40x128xf32>
    %19 = tpu.matmul %17, %18, %cst_14 {dimension_numbers = #tpu.dot_dimension_numbers<[1], [0], [0], [1], [0, 0, 1, 1], [], []>} : vector<40x256xbf16>, vector<256x128xbf16>, vector<40x128xf32> -> vector<40x128xf32>
    %c0_15 = arith.constant 0 : index
    %c0_16 = arith.constant 0 : index
    %20 = vector.load %arg7[%c0_15, %c0_16] : memref<1x128xf32, #tpu.memory_space<vmem>>, vector<1x128xf32>
    %21 = vector.broadcast %20 : vector<1x128xf32> to vector<40x128xf32>
    %22 = arith.addf %19, %21 : vector<40x128xf32>
    %23 = math.tanh %22 : vector<40x128xf32>
    %cst_17 = arith.constant 1.000000e+00 : f32
    %24 = vector.broadcast %cst_17 : f32 to vector<40x128xf32>
    %25 = arith.mulf %23, %24 : vector<40x128xf32>
    %c0_18 = arith.constant 0 : index
    %c0_19 = arith.constant 0 : index
    %26 = vector.load %arg8[%c0_18, %c0_19] : memref<40x128xf32, #tpu.memory_space<vmem>>, vector<40x128xf32>
    tpu.vector_store %arg8[%c0_18, %c0_19], %25 {strides = array<i32>} : memref<40x128xf32, #tpu.memory_space<vmem>>, vector<40x128xf32>,
    return
  }
  func.func @transform_0(%arg0: i32) -> (i32, i32) {
    %c0_i32 = arith.constant 0 : i32
    %c0_i32_0 = arith.constant 0 : i32
    return %arg0, %c0_i32 : i32, i32
  }
  func.func @transform_1(%arg0: i32) -> (i32, i32) {
    %c0_i32 = arith.constant 0 : i32
    %c0_i32_0 = arith.constant 0 : i32
    %c0_i32_1 = arith.constant 0 : i32
    return %c0_i32, %c0_i32_0 : i32, i32
  }
  func.func @transform_2(%arg0: i32) -> (i32, i32) {
    %c0_i32 = arith.constant 0 : i32
    %c0_i32_0 = arith.constant 0 : i32
    %c0_i32_1 = arith.constant 0 : i32
    return %c0_i32, %c0_i32_0 : i32, i32
  }
  func.func @transform_3(%arg0: i32) -> (i32, i32) {
    %c0_i32 = arith.constant 0 : i32
    %c0_i32_0 = arith.constant 0 : i32
    %c0_i32_1 = arith.constant 0 : i32
    return %c0_i32, %c0_i32_0 : i32, i32
  }
  func.func @transform_4(%arg0: i32) -> (i32, i32) {
    %c0_i32 = arith.constant 0 : i32
    %c0_i32_0 = arith.constant 0 : i32
    %c0_i32_1 = arith.constant 0 : i32
    return %c0_i32, %c0_i32_0 : i32, i32
  }
  func.func @transform_5(%arg0: i32) -> (i32, i32) {
    %c0_i32 = arith.constant 0 : i32
    %c0_i32_0 = arith.constant 0 : i32
    %c0_i32_1 = arith.constant 0 : i32
    return %c0_i32, %c0_i32_0 : i32, i32
  }
  func.func @transform_6(%arg0: i32) -> (i32, i32) {
    %c0_i32 = arith.constant 0 : i32
    %c0_i32_0 = arith.constant 0 : i32
    %c0_i32_1 = arith.constant 0 : i32
    return %c0_i32, %c0_i32_0 : i32, i32
  }
  func.func @transform_7(%arg0: i32) -> (i32, i32) {
    %c0_i32 = arith.constant 0 : i32
    %c0_i32_0 = arith.constant 0 : i32
    return %arg0, %c0_i32 : i32, i32
  }
}

</mosaic_0001>

<llo_original>
// kernel: actor_forward.1
$region0: #{actor_forward.1}
  #allocation0 [shape = 'u32[]', space=smem, size = 0x4, offset = 0x4, fixed_abs, tag = 'smem constant byte address 0x4 - core index']
  #allocation1 [shape = 'u32[144,128]{1,0:T(1,128)}', space=vmem, size = 0x12000, scoped, tag = 'internal scratch']
  %s0 = inlined_call_operand.vmem [shape: f32[40,24], index: 0, kind: input, shape index: {}]
  %s1 = inlined_call_operand.vmem [shape: bf16[24,256], index: 1, kind: input, shape index: {}]
  %s2 = inlined_call_operand.vmem [shape: f32[1,256], index: 2, kind: input, shape index: {}]
  %s3 = inlined_call_operand.hbm [shape: bf16[256,256], index: 3, kind: input, shape index: {}]
  %s4 = inlined_call_operand.vmem [shape: f32[1,256], index: 4, kind: input, shape index: {}]
  %s5 = inlined_call_operand.vmem [shape: bf16[256,128], index: 5, kind: input, shape index: {}]
  %s6 = inlined_call_operand.vmem [shape: f32[1,128], index: 6, kind: input, shape index: {}]
  %s7 = inlined_call_operand.vmem [shape: f32[40,128], index: 7, kind: output, shape index: {}]
  %s8 = sld [smem:[#allocation0]]
  $region42: #{actor_forward.1} parent=0
    _
  %s10 = ssub.s32 1, %s8
  %s11 = scalar_select 0, %s10, %s8
  $region1: #{actor_forward.1} parent=0
    #allocation2 [shape = 'u8[131072]{0}', space=vmem, size = 0x20000, scoped, tag = 'input window, operand 3, single buffered']
    #allocation3 [shape = 's32[1]{0}', space=sflag, size = 0x4, scoped, tag = 'scoped memory for actor_forward.1']
    %12 = vsyncpa [#allocation3], 0
    // Predicated region
    $region2: #{actor_forward.1} parent=1 // pred_check
      _
    $region3: #{actor_forward.1} parent=1 // pred_check_branch
      %14 = sbr.rel (0) target = $region5
    $region4: #{actor_forward.1} parent=1 // pred_region
      _
    $region5: #{actor_forward.1} parent=1 // pred_fallthru
      _
    // Predicated region
    $region6: #{actor_forward.1} parent=1 // pred_check
      _
    $region7: #{actor_forward.1} parent=1 // pred_check_branch
      %16 = sbr.rel (0) target = $region9
    $region8: #{actor_forward.1} parent=1 // pred_region
      _
    $region9: #{actor_forward.1} parent=1 // pred_fallthru
      _
    // Predicated region
    $region10: #{actor_forward.1} parent=1 // pred_check
      _
    $region11: #{actor_forward.1} parent=1 // pred_check_branch
      %18 = sbr.rel (0) target = $region13
    $region12: #{actor_forward.1} parent=1 // pred_region
      _
    $region13: #{actor_forward.1} parent=1 // pred_fallthru
      _
    // Predicated region
    $region14: #{actor_forward.1} parent=1 // pred_check
      _
    $region15: #{actor_forward.1} parent=1 // pred_check_branch
      %20 = sbr.rel (0) target = $region17
    $region16: #{actor_forward.1} parent=1 // pred_region
      %s22 = ssub.s32 4096, 4096
      %23 = vsyncadd [#allocation3], %s22
      %s24 = sshll.u32 [#allocation2], 4
      %s25 = int_to_ptr.vmem [resolvable:$true] %s24
      %30 = dma.hbm_to_vmem [thread:$0]  %s3, 4096, %s25, [#allocation3], 128, 128, 8
    $region17: #{actor_forward.1} parent=1 // pred_fallthru
      _
    // Predicated region
    $region18: #{actor_forward.1} parent=1 // pred_check
      _
    $region19: #{actor_forward.1} parent=1 // pred_check_branch
      %32 = sbr.rel (0) target = $region21
    $region20: #{actor_forward.1} parent=1 // pred_region
      _
    $region21: #{actor_forward.1} parent=1 // pred_fallthru
      _
    // Predicated region
    $region22: #{actor_forward.1} parent=1 // pred_check
      _
    $region23: #{actor_forward.1} parent=1 // pred_check_branch
      %34 = sbr.rel (0) target = $region25
    $region24: #{actor_forward.1} parent=1 // pred_region
      _
    $region25: #{actor_forward.1} parent=1 // pred_fallthru
      _
    // Predicated region
    $region26: #{actor_forward.1} parent=1 // pred_check
      _
    $region27: #{actor_forward.1} parent=1 // pred_check_branch
      %36 = sbr.rel (0) target = $region29
    $region28: #{actor_forward.1} parent=1 // pred_region
      _
    $region29: #{actor_forward.1} parent=1 // pred_fallthru
      _
    // Predicated region
    $region30: #{actor_forward.1} parent=1 // pred_check
      _
    $region31: #{actor_forward.1} parent=1 // pred_check_branch
      %38 = sbr.rel (0) target = $region33
    $region32: #{actor_forward.1} parent=1 // pred_region
      %39 = dma.done [#allocation3], 4096
    $region33: #{actor_forward.1} parent=1 // pred_fallthru
      _
    %v41 = vld [vmem:[%s0] sm:$0xff]
    %v42 = vld [vmem:[%s0 + $0x8] sm:$0xff]
    %v43 = vld [vmem:[%s0 + $0x10] sm:$0xff]
    %v44 = vld [vmem:[%s0 + $0x18] sm:$0xff]
    %v45 = vld [vmem:[%s0 + $0x20] sm:$0xff]
    %v46 = vpack.c.bf16 %v42, %v41
    %v47 = vpack.c.bf16 %v44, %v43
    %v48 = vpack.c.bf16 %v45, %v45
    %v49 = vld [vmem:[%s1] sm:$0xff]
    %v50 = vld [vmem:[%s1 + $0x8] sm:$0xff]
    %v51 = vld [vmem:[%s1 + $0x10] sm:$0xff]
    %v52 = vld [vmem:[%s2] sm:$0x3]
    %v54 = vlaneseq
    %v55 = vshrl.u32 %v54, 7
    %v56 = vsub.s32 0, %v55
    %v57 = vrot.slane %v52, %v56
    %v58 = vlaneseq
    %v59 = vshrl.u32 %v58, 7
    %v60 = vsub.s32 1, %v59
    %v61 = vrot.slane %v52, %v60
    %v67 = vunpack.c.l.b16 %v49
    %v68 = vunpack.c.h.b16 %v49
    %v69 = vunpack.c.l.b16 %v50
    %v70 = vunpack.c.h.b16 %v50
    %v71 = vunpack.c.l.b16 %v51
    %v72 = vunpack.c.h.b16 %v51
    %v73 = vpack.c.b16 %v69, %v67
    %v74 = vpack.c.b16 %v70, %v68
    %v75 = vpack.c.b16 %v71, %v71
    %v76 = vpack.c.b16 %v72, %v72
    %vm79 = vcmask 195584
    %v81 = vsel %vm79, %v46, 0
    %v84 = vsel %vm79, %v47, 0
    %v87 = vsel %vm79, %v48, 0
    %vm89 = vcmask 1043456
    %v91 = vsel %vm89, %v75, 0
    %v94 = vsel %vm89, %v76, 0
    %96 = vmatprep.subr.bf16.mxu0 %v74
    %97 = vmatpush1.bf16.msra.mxu0 %v73
    %98 = vmatprep.subr.bf16.mxu0 %v94
    %99 = vmatpush1.bf16.msra.mxu0 %v91
    %100 = vmatprep.subr.bf16.mxu0 0
    %101 = vmatpush1.bf16.msra.mxu0 0
    %102 = vmatprep.subr.bf16.mxu0 0
    %103 = vmatpush1.bf16.msra.mxu0 0
    %104 = vmatprep.subr.bf16.mxu0 0
    %105 = vmatpush1.bf16.msra.mxu0 0
    %106 = vmatprep.subr.bf16.mxu0 0
    %107 = vmatpush1.bf16.msra.mxu0 0
    %108 = vmatprep.subr.bf16.mxu0 0
    %109 = vmatpush1.bf16.msra.mxu0 0
    %110 = vmatprep.subr.bf16.mxu0 0
    %111 = vmatpush1.bf16.msra.mxu0 0
    %112 = vmatprep.subr.bf16.mxu0 0
    %113 = vmatpush1.bf16.msra.mxu0 0
    %114 = vmatprep.subr.bf16.mxu0 0
    %115 = vmatpush1.bf16.msra.mxu0 0
    %116 = vmatprep.subr.bf16.mxu0 0
    %117 = vmatpush1.bf16.msra.mxu0 0
    %118 = vmatprep.subr.bf16.mxu0 0
    %119 = vmatpush1.bf16.msra.mxu0 0
    %120 = vmatprep.subr.bf16.mxu0 0
    %121 = vmatpush1.bf16.msra.mxu0 0
    %122 = vmatprep.subr.bf16.mxu0 0
    %123 = vmatpush1.bf16.msra.mxu0 0
    %124 = vmatprep.subr.bf16.mxu0 0
    %125 = vmatpush1.bf16.msra.mxu0 0
    %126 = vmatprep.subr.bf16.mxu0 0
    %127 = vmatpush1.bf16.msra.mxu0 0
    %128 = vmatprep.mubr.bf16.mxu0 0
    %129 = vmatmul.mubr.bf16.gmra.mrb[0].mxu0 %v81
    %v130 = vpop.f32.mrb[0].mxu0
    %v131 = vadd.f32 %v57, %v130
    %v132 = vpop.f32.mrb[0].mxu0
    %v133 = vadd.f32 %v61, %v132
    %v134 = vpop.f32.mrb[0].mxu0
    %v135 = vadd.f32 %v57, %v134
    %v136 = vpop.f32.mrb[0].mxu0
    %v137 = vadd.f32 %v61, %v136
    %138 = vmatprep.mubr.bf16.mxu0 0
    %139 = vmatmul.mubr.bf16.gmra.mrb[0].mxu0 %v84
    %v140 = vpop.f32.mrb[0].mxu0
    %v141 = vadd.f32 %v57, %v140
    %v142 = vpop.f32.mrb[0].mxu0
    %v143 = vadd.f32 %v61, %v142
    %v144 = vpop.f32.mrb[0].mxu0
    %v145 = vadd.f32 %v57, %v144
    %v146 = vpop.f32.mrb[0].mxu0
    %v147 = vadd.f32 %v61, %v146
    %148 = vmatprep.mubr.bf16.mxu0 0
    %149 = vmatmul.mubr.bf16.gmra.mrb[0].mxu0 %v87
    %v150 = vpop.f32.mrb[0].mxu0
    %v151 = vadd.f32 %v57, %v150
    %v152 = vpop.f32.mrb[0].mxu0
    %v153 = vadd.f32 %v61, %v152
    %v154 = vpop.f32.mrb[0].mxu0
    %v155 = vpop.f32.mrb[0].mxu0
    %156 = vdwg.mxu0
    %v157 = vmax.f32 %v131, 0.0
    %v158 = vmax.f32 %v133, 0.0
    %v159 = vmax.f32 %v135, 0.0
    %v160 = vmax.f32 %v137, 0.0
    %v161 = vmax.f32 %v141, 0.0
    %v162 = vmax.f32 %v143, 0.0
    %v163 = vmax.f32 %v145, 0.0
    %v164 = vmax.f32 %v147, 0.0
    %v165 = vmax.f32 %v151, 0.0
    %v166 = vmax.f32 %v153, 0.0
    %v167 = vpack.c.bf16 %v159, %v157
    %v168 = vpack.c.bf16 %v160, %v158
    %v169 = vpack.c.bf16 %v163, %v161
    %v170 = vpack.c.bf16 %v164, %v162
    %v171 = vpack.c.bf16 %v165, %v165
    %v172 = vpack.c.bf16 %v166, %v166
    %v173 = vld [vmem:[#allocation2] sm:$0xff]
    %v174 = vld [vmem:[#allocation2 + $0x8] sm:$0xff]
    %v175 = vld [vmem:[#allocation2 + $0x10] sm:$0xff]
    %v176 = vld [vmem:[#allocation2 + $0x18] sm:$0xff]
    %v177 = vld [vmem:[#allocation2 + $0x20] sm:$0xff]
    %v178 = vld [vmem:[#allocation2 + $0x28] sm:$0xff]
    %v179 = vld [vmem:[#allocation2 + $0x30] sm:$0xff]
    %v180 = vld [vmem:[#allocation2 + $0x38] sm:$0xff]
    %v181 = vld [vmem:[#allocation2 + $0x40] sm:$0xff]
    %v182 = vld [vmem:[#allocation2 + $0x48] sm:$0xff]
    %v183 = vld [vmem:[#allocation2 + $0x50] sm:$0xff]
    %v184 = vld [vmem:[#allocation2 + $0x58] sm:$0xff]
    %v185 = vld [vmem:[#allocation2 + $0x60] sm:$0xff]
    %v186 = vld [vmem:[#allocation2 + $0x68] sm:$0xff]
    %v187 = vld [vmem:[#allocation2 + $0x70] sm:$0xff]
    %v188 = vld [vmem:[#allocation2 + $0x78] sm:$0xff]
    %v189 = vld [vmem:[#allocation2 + $0x80] sm:$0xff]
    %v190 = vld [vmem:[#allocation2 + $0x88] sm:$0xff]
    %v191 = vld [vmem:[#allocation2 + $0x90] sm:$0xff]
    %v192 = vld [vmem:[#allocation2 + $0x98] sm:$0xff]
    %v193 = vld [vmem:[#allocation2 + $0xa0] sm:$0xff]
    %v194 = vld [vmem:[#allocation2 + $0xa8] sm:$0xff]
    %v195 = vld [vmem:[#allocation2 + $0xb0] sm:$0xff]
    %v196 = vld [vmem:[#allocation2 + $0xb8] sm:$0xff]
    %v197 = vld [vmem:[#allocation2 + $0xc0] sm:$0xff]
    %v198 = vld [vmem:[#allocation2 + $0xc8] sm:$0xff]
    %v199 = vld [vmem:[#allocation2 + $0xd0] sm:$0xff]
    %v200 = vld [vmem:[#allocation2 + $0xd8] sm:$0xff]
    %v201 = vld [vmem:[#allocation2 + $0xe0] sm:$0xff]
    %v202 = vld [vmem:[#allocation2 + $0xe8] sm:$0xff]
    %v203 = vld [vmem:[#allocation2 + $0xf0] sm:$0xff]
    %v204 = vld [vmem:[#allocation2 + $0xf8] sm:$0xff]
    %v205 = vld [vmem:[%s4] sm:$0x3]
    %v207 = vlaneseq
    %v208 = vshrl.u32 %v207, 7
    %v209 = vsub.s32 0, %v208
    %v210 = vrot.slane %v205, %v209
    %v211 = vlaneseq
    %v212 = vshrl.u32 %v211, 7
    %v213 = vsub.s32 1, %v212
    %v214 = vrot.slane %v205, %v213
    %v249 = vunpack.c.l.b16 %v173
    %v250 = vunpack.c.h.b16 %v173
    %v251 = vunpack.c.l.b16 %v174
    %v252 = vunpack.c.h.b16 %v174
    %v253 = vunpack.c.l.b16 %v175
    %v254 = vunpack.c.h.b16 %v175
    %v255 = vunpack.c.l.b16 %v176
    %v256 = vunpack.c.h.b16 %v176
    %v257 = vunpack.c.l.b16 %v177
    %v258 = vunpack.c.h.b16 %v177
    %v259 = vunpack.c.l.b16 %v178
    %v260 = vunpack.c.h.b16 %v178
    %v261 = vunpack.c.l.b16 %v179
    %v262 = vunpack.c.h.b16 %v179
    %v263 = vunpack.c.l.b16 %v180
    %v264 = vunpack.c.h.b16 %v180
    %v265 = vunpack.c.l.b16 %v181
    %v266 = vunpack.c.h.b16 %v181
    %v267 = vunpack.c.l.b16 %v182
    %v268 = vunpack.c.h.b16 %v182
    %v269 = vunpack.c.l.b16 %v183
    %v270 = vunpack.c.h.b16 %v183
    %v271 = vunpack.c.l.b16 %v184
    %v272 = vunpack.c.h.b16 %v184
    %v273 = vunpack.c.l.b16 %v185
    %v274 = vunpack.c.h.b16 %v185
    %v275 = vunpack.c.l.b16 %v186
    %v276 = vunpack.c.h.b16 %v186
    %v277 = vunpack.c.l.b16 %v187
    %v278 = vunpack.c.h.b16 %v187
    %v279 = vunpack.c.l.b16 %v188
    %v280 = vunpack.c.h.b16 %v188
    %v281 = vunpack.c.l.b16 %v189
    %v282 = vunpack.c.h.b16 %v189
    %v283 = vunpack.c.l.b16 %v190
    %v284 = vunpack.c.h.b16 %v190
    %v285 = vunpack.c.l.b16 %v191
    %v286 = vunpack.c.h.b16 %v191
    %v287 = vunpack.c.l.b16 %v192
    %v288 = vunpack.c.h.b16 %v192
    %v289 = vunpack.c.l.b16 %v193
    %v290 = vunpack.c.h.b16 %v193
    %v291 = vunpack.c.l.b16 %v194
    %v292 = vunpack.c.h.b16 %v194
    %v293 = vunpack.c.l.b16 %v195
    %v294 = vunpack.c.h.b16 %v195
    %v295 = vunpack.c.l.b16 %v196
    %v296 = vunpack.c.h.b16 %v196
    %v297 = vunpack.c.l.b16 %v197
    %v298 = vunpack.c.h.b16 %v197
    %v299 = vunpack.c.l.b16 %v198
    %v300 = vunpack.c.h.b16 %v198
    %v301 = vunpack.c.l.b16 %v199
    %v302 = vunpack.c.h.b16 %v199
    %v303 = vunpack.c.l.b16 %v200
    %v304 = vunpack.c.h.b16 %v200
    %v305 = vunpack.c.l.b16 %v201
    %v306 = vunpack.c.h.b16 %v201
    %v307 = vunpack.c.l.b16 %v202
    %v308 = vunpack.c.h.b16 %v202
    %v309 = vunpack.c.l.b16 %v203
    %v310 = vunpack.c.h.b16 %v203
    %v311 = vunpack.c.l.b16 %v204
    %v312 = vunpack.c.h.b16 %v204
    %v313 = vpack.c.b16 %v251, %v249
    %v314 = vpack.c.b16 %v252, %v250
    %v315 = vpack.c.b16 %v255, %v253
    %v316 = vpack.c.b16 %v256, %v254
    %v317 = vpack.c.b16 %v259, %v257
    %v318 = vpack.c.b16 %v260, %v258
    %v319 = vpack.c.b16 %v263, %v261
    %v320 = vpack.c.b16 %v264, %v262
    %v321 = vpack.c.b16 %v267, %v265
    %v322 = vpack.c.b16 %v268, %v266
    %v323 = vpack.c.b16 %v271, %v269
    %v324 = vpack.c.b16 %v272, %v270
    %v325 = vpack.c.b16 %v275, %v273
    %v326 = vpack.c.b16 %v276, %v274
    %v327 = vpack.c.b16 %v279, %v277
    %v328 = vpack.c.b16 %v280, %v278
    %v329 = vpack.c.b16 %v283, %v281
    %v330 = vpack.c.b16 %v284, %v282
    %v331 = vpack.c.b16 %v287, %v285
    %v332 = vpack.c.b16 %v288, %v286
    %v333 = vpack.c.b16 %v291, %v289
    %v334 = vpack.c.b16 %v292, %v290
    %v335 = vpack.c.b16 %v295, %v293
    %v336 = vpack.c.b16 %v296, %v294
    %v337 = vpack.c.b16 %v299, %v297
    %v338 = vpack.c.b16 %v300, %v298
    %v339 = vpack.c.b16 %v303, %v301
    %v340 = vpack.c.b16 %v304, %v302
    %v341 = vpack.c.b16 %v307, %v305
    %v342 = vpack.c.b16 %v308, %v306
    %v343 = vpack.c.b16 %v311, %v309
    %v344 = vpack.c.b16 %v312, %v310
    %377 = vmatprep.subr.bf16.mxu0 %v314
    %378 = vmatpush1.bf16.msra.mxu0 %v313
    %379 = vmatprep.subr.bf16.mxu0 %v316
    %380 = vmatpush1.bf16.msra.mxu0 %v315
    %381 = vmatprep.subr.bf16.mxu0 %v318
    %382 = vmatpush1.bf16.msra.mxu0 %v317
    %383 = vmatprep.subr.bf16.mxu0 %v320
    %384 = vmatpush1.bf16.msra.mxu0 %v319
    %385 = vmatprep.subr.bf16.mxu0 %v322
    %386 = vmatpush1.bf16.msra.mxu0 %v321
    %387 = vmatprep.subr.bf16.mxu0 %v324
    %388 = vmatpush1.bf16.msra.mxu0 %v323
    %389 = vmatprep.subr.bf16.mxu0 %v326
    %390 = vmatpush1.bf16.msra.mxu0 %v325
    %391 = vmatprep.subr.bf16.mxu0 %v328
    %392 = vmatpush1.bf16.msra.mxu0 %v327
    %393 = vmatprep.subr.bf16.mxu0 %v330
    %394 = vmatpush1.bf16.msra.mxu0 %v329
    %395 = vmatprep.subr.bf16.mxu0 %v332
    %396 = vmatpush1.bf16.msra.mxu0 %v331
    %397 = vmatprep.subr.bf16.mxu0 %v334
    %398 = vmatpush1.bf16.msra.mxu0 %v333
    %399 = vmatprep.subr.bf16.mxu0 %v336
    %400 = vmatpush1.bf16.msra.mxu0 %v335
    %401 = vmatprep.subr.bf16.mxu0 %v338
    %402 = vmatpush1.bf16.msra.mxu0 %v337
    %403 = vmatprep.subr.bf16.mxu0 %v340
    %404 = vmatpush1.bf16.msra.mxu0 %v339
    %405 = vmatprep.subr.bf16.mxu0 %v342
    %406 = vmatpush1.bf16.msra.mxu0 %v341
    %407 = vmatprep.subr.bf16.mxu0 %v344
    %408 = vmatpush1.bf16.msra.mxu0 %v343
    %409 = vmatprep.mubr.bf16.mxu0 %v168
    %410 = vmatmul.mubr.bf16.gmra.mrb[0].mxu0 %v167
    %v411 = vpop.f32.mrb[0].mxu0
    %v412 = vadd.f32 %v210, %v411
    %v413 = vpop.f32.mrb[0].mxu0
    %v414 = vadd.f32 %v214, %v413
    %v415 = vpop.f32.mrb[0].mxu0
    %v416 = vadd.f32 %v210, %v415
    %v417 = vpop.f32.mrb[0].mxu0
    %v418 = vadd.f32 %v214, %v417
    %419 = vmatprep.mubr.bf16.mxu0 %v170
    %420 = vmatmul.mubr.bf16.gmra.mrb[0].mxu0 %v169
    %v421 = vpop.f32.mrb[0].mxu0
    %v422 = vadd.f32 %v210, %v421
    %v423 = vpop.f32.mrb[0].mxu0
    %v424 = vadd.f32 %v214, %v423
    %v425 = vpop.f32.mrb[0].mxu0
    %v426 = vadd.f32 %v210, %v425
    %v427 = vpop.f32.mrb[0].mxu0
    %v428 = vadd.f32 %v214, %v427
    %429 = vmatprep.mubr.bf16.mxu0 %v172
    %430 = vmatmul.mubr.bf16.gmra.mrb[0].mxu0 %v171
    %v431 = vpop.f32.mrb[0].mxu0
    %v432 = vadd.f32 %v210, %v431
    %v433 = vpop.f32.mrb[0].mxu0
    %v434 = vadd.f32 %v214, %v433
    %v435 = vpop.f32.mrb[0].mxu0
    %v436 = vpop.f32.mrb[0].mxu0
    %437 = vdwg.mxu0
    %v438 = vmax.f32 %v412, 0.0
    %v439 = vmax.f32 %v414, 0.0
    %v440 = vmax.f32 %v416, 0.0
    %v441 = vmax.f32 %v418, 0.0
    %v442 = vmax.f32 %v422, 0.0
    %v443 = vmax.f32 %v424, 0.0
    %v444 = vmax.f32 %v426, 0.0
    %v445 = vmax.f32 %v428, 0.0
    %v446 = vmax.f32 %v432, 0.0
    %v447 = vmax.f32 %v434, 0.0
    %v448 = vpack.c.bf16 %v440, %v438
    %v449 = vpack.c.bf16 %v441, %v439
    %v450 = vpack.c.bf16 %v444, %v442
    %v451 = vpack.c.bf16 %v445, %v443
    %v452 = vpack.c.bf16 %v446, %v446
    %v453 = vpack.c.bf16 %v447, %v447
    %v454 = vld [vmem:[%s5] sm:$0xf]
    %v455 = vld [vmem:[%s5 + $0x4] sm:$0xf]
    %v456 = vld [vmem:[%s5 + $0x8] sm:$0xf]
    %v457 = vld [vmem:[%s5 + $0xc] sm:$0xf]
    %v458 = vld [vmem:[%s5 + $0x10] sm:$0xf]
    %v459 = vld [vmem:[%s5 + $0x14] sm:$0xf]
    %v460 = vld [vmem:[%s5 + $0x18] sm:$0xf]
    %v461 = vld [vmem:[%s5 + $0x1c] sm:$0xf]
    %v462 = vld [vmem:[%s5 + $0x20] sm:$0xf]
    %v463 = vld [vmem:[%s5 + $0x24] sm:$0xf]
    %v464 = vld [vmem:[%s5 + $0x28] sm:$0xf]
    %v465 = vld [vmem:[%s5 + $0x2c] sm:$0xf]
    %v466 = vld [vmem:[%s5 + $0x30] sm:$0xf]
    %v467 = vld [vmem:[%s5 + $0x34] sm:$0xf]
    %v468 = vld [vmem:[%s5 + $0x38] sm:$0xf]
    %v469 = vld [vmem:[%s5 + $0x3c] sm:$0xf]
    %v470 = vld [vmem:[%s5 + $0x40] sm:$0xf]
    %v471 = vld [vmem:[%s5 + $0x44] sm:$0xf]
    %v472 = vld [vmem:[%s5 + $0x48] sm:$0xf]
    %v473 = vld [vmem:[%s5 + $0x4c] sm:$0xf]
    %v474 = vld [vmem:[%s5 + $0x50] sm:$0xf]
    %v475 = vld [vmem:[%s5 + $0x54] sm:$0xf]
    %v476 = vld [vmem:[%s5 + $0x58] sm:$0xf]
    %v477 = vld [vmem:[%s5 + $0x5c] sm:$0xf]
    %v478 = vld [vmem:[%s5 + $0x60] sm:$0xf]
    %v479 = vld [vmem:[%s5 + $0x64] sm:$0xf]
    %v480 = vld [vmem:[%s5 + $0x68] sm:$0xf]
    %v481 = vld [vmem:[%s5 + $0x6c] sm:$0xf]
    %v482 = vld [vmem:[%s5 + $0x70] sm:$0xf]
    %v483 = vld [vmem:[%s5 + $0x74] sm:$0xf]
    %v484 = vld [vmem:[%s5 + $0x78] sm:$0xf]
    %v485 = vld [vmem:[%s5 + $0x7c] sm:$0xf]
    %v486 = vld [vmem:[%s6] sm:$0x1]
    %v488 = vlaneseq
    %v489 = vshrl.u32 %v488, 7
    %v490 = vsub.s32 0, %v489
    %v491 = vrot.slane %v486, %v490
    %v525 = vunpack.c.l.b16 %v454
    %v526 = vunpack.c.l.b16 %v455
    %v527 = vunpack.c.l.b16 %v456
    %v528 = vunpack.c.l.b16 %v457
    %v529 = vunpack.c.l.b16 %v458
    %v530 = vunpack.c.l.b16 %v459
    %v531 = vunpack.c.l.b16 %v460
    %v532 = vunpack.c.l.b16 %v461
    %v533 = vunpack.c.l.b16 %v462
    %v534 = vunpack.c.l.b16 %v463
    %v535 = vunpack.c.l.b16 %v464
    %v536 = vunpack.c.l.b16 %v465
    %v537 = vunpack.c.l.b16 %v466
    %v538 = vunpack.c.l.b16 %v467
    %v539 = vunpack.c.l.b16 %v468
    %v540 = vunpack.c.l.b16 %v469
    %v541 = vunpack.c.l.b16 %v470
    %v542 = vunpack.c.l.b16 %v471
    %v543 = vunpack.c.l.b16 %v472
    %v544 = vunpack.c.l.b16 %v473
    %v545 = vunpack.c.l.b16 %v474
    %v546 = vunpack.c.l.b16 %v475
    %v547 = vunpack.c.l.b16 %v476
    %v548 = vunpack.c.l.b16 %v477
    %v549 = vunpack.c.l.b16 %v478
    %v550 = vunpack.c.l.b16 %v479
    %v551 = vunpack.c.l.b16 %v480
    %v552 = vunpack.c.l.b16 %v481
    %v553 = vunpack.c.l.b16 %v482
    %v554 = vunpack.c.l.b16 %v483
    %v555 = vunpack.c.l.b16 %v484
    %v556 = vunpack.c.l.b16 %v485
    %v557 = vpack.c.b16 %v526, %v525
    %v558 = vpack.c.b16 %v528, %v527
    %v559 = vpack.c.b16 %v530, %v529
    %v560 = vpack.c.b16 %v532, %v531
    %v561 = vpack.c.b16 %v534, %v533
    %v562 = vpack.c.b16 %v536, %v535
    %v563 = vpack.c.b16 %v538, %v537
    %v564 = vpack.c.b16 %v540, %v539
    %v565 = vpack.c.b16 %v542, %v541
    %v566 = vpack.c.b16 %v544, %v543
    %v567 = vpack.c.b16 %v546, %v545
    %v568 = vpack.c.b16 %v548, %v547
    %v569 = vpack.c.b16 %v550, %v549
    %v570 = vpack.c.b16 %v552, %v551
    %v571 = vpack.c.b16 %v554, %v553
    %v572 = vpack.c.b16 %v556, %v555
    %589 = vmatprep.subr.bf16.mxu0 0
    %590 = vmatpush1.bf16.msra.mxu0 %v557
    %591 = vmatprep.subr.bf16.mxu0 0
    %592 = vmatpush1.bf16.msra.mxu0 %v558
    %593 = vmatprep.subr.bf16.mxu0 0
    %594 = vmatpush1.bf16.msra.mxu0 %v559
    %595 = vmatprep.subr.bf16.mxu0 0
    %596 = vmatpush1.bf16.msra.mxu0 %v560
    %597 = vmatprep.subr.bf16.mxu0 0
    %598 = vmatpush1.bf16.msra.mxu0 %v561
    %599 = vmatprep.subr.bf16.mxu0 0
    %600 = vmatpush1.bf16.msra.mxu0 %v562
    %601 = vmatprep.subr.bf16.mxu0 0
    %602 = vmatpush1.bf16.msra.mxu0 %v563
    %603 = vmatprep.subr.bf16.mxu0 0
    %604 = vmatpush1.bf16.msra.mxu0 %v564
    %605 = vmatprep.subr.bf16.mxu0 0
    %606 = vmatpush1.bf16.msra.mxu0 %v565
    %607 = vmatprep.subr.bf16.mxu0 0
    %608 = vmatpush1.bf16.msra.mxu0 %v566
    %609 = vmatprep.subr.bf16.mxu0 0
    %610 = vmatpush1.bf16.msra.mxu0 %v567
    %611 = vmatprep.subr.bf16.mxu0 0
    %612 = vmatpush1.bf16.msra.mxu0 %v568
    %613 = vmatprep.subr.bf16.mxu0 0
    %614 = vmatpush1.bf16.msra.mxu0 %v569
    %615 = vmatprep.subr.bf16.mxu0 0
    %616 = vmatpush1.bf16.msra.mxu0 %v570
    %617 = vmatprep.subr.bf16.mxu0 0
    %618 = vmatpush1.bf16.msra.mxu0 %v571
    %619 = vmatprep.subr.bf16.mxu0 0
    %620 = vmatpush1.bf16.msra.mxu0 %v572
    %621 = vmatprep.mubr.bf16.mxu0 %v449
    %622 = vmatmul.mubr.bf16.gmra.mrb[0].mxu0 %v448
    %v623 = vpop.f32.mrb[0].mxu0
    %v624 = vadd.f32 %v491, %v623
    %v625 = vpop.f32.mrb[0].mxu0
    %v626 = vpop.f32.mrb[0].mxu0
    %v627 = vadd.f32 %v491, %v626
    %v628 = vpop.f32.mrb[0].mxu0
    %629 = vmatprep.mubr.bf16.mxu0 %v451
    %630 = vmatmul.mubr.bf16.gmra.mrb[0].mxu0 %v450
    %v631 = vpop.f32.mrb[0].mxu0
    %v632 = vadd.f32 %v491, %v631
    %v633 = vpop.f32.mrb[0].mxu0
    %v634 = vpop.f32.mrb[0].mxu0
    %v635 = vadd.f32 %v491, %v634
    %v636 = vpop.f32.mrb[0].mxu0
    %637 = vmatprep.mubr.bf16.mxu0 %v453
    %638 = vmatmul.mubr.bf16.gmra.mrb[0].mxu0 %v452
    %v639 = vpop.f32.mrb[0].mxu0
    %v640 = vadd.f32 %v491, %v639
    %v641 = vpop.f32.mrb[0].mxu0
    %v642 = vpop.f32.mrb[0].mxu0
    %v643 = vpop.f32.mrb[0].mxu0
    %644 = vdwg.mxu0
    %v645 = vtanh.pop %v624
    %v646 = vtanh.pop %v627
    %v647 = vtanh.pop %v632
    %v648 = vtanh.pop %v635
    %v649 = vtanh.pop %v640
    %650 = vst [vmem:[%s7] sm:$0xff] %v645
    %651 = vst [vmem:[%s7 + $0x8] sm:$0xff] %v646
    %652 = vst [vmem:[%s7 + $0x10] sm:$0xff] %v647
    %653 = vst [vmem:[%s7 + $0x18] sm:$0xff] %v648
    %654 = vst [vmem:[%s7 + $0x20] sm:$0xff] %v649
    // Predicated region
    $region34: #{actor_forward.1} parent=1 // pred_check
      _
    $region35: #{actor_forward.1} parent=1 // pred_check_branch
      %656 = sbr.rel (0) target = $region37
    $region36: #{actor_forward.1} parent=1 // pred_region
      _
    $region37: #{actor_forward.1} parent=1 // pred_fallthru
      _
    // Predicated region
    $region38: #{actor_forward.1} parent=1 // pred_check
      _
    $region39: #{actor_forward.1} parent=1 // pred_check_branch
      %658 = sbr.rel (0) target = $region41
    $region40: #{actor_forward.1} parent=1 // pred_region
      _
    $region41: #{actor_forward.1} parent=1 // pred_fallthru
      _
    %659 = vsyncpa [#allocation3], 1

</llo_original>
